<compile_context>
chip_gen: v7x
topology: tpu7x:2x2x1
jax: 0.10.0
libtpu: 0.0.40
codegen_flags: <defaults>
</compile_context>

<pallas_src>
import jax
import jax.numpy as jnp
from jax.experimental import pallas as pl
from jax.experimental.pallas import tpu as pltpu

KH = 3
KW = 3


def model_tanh_forward(x, w_oihw, bias):
    """x: (N, Cin, H, W) f32; w_oihw: (Cout, Cin, KH, KW); bias: (Cout,)."""
    N, Cin, H, W = x.shape
    Cout = w_oihw.shape[0]
    Ho, Wo = H - KH + 1, W - KW + 1
    HW = H * W

    # Pad the flattened spatial (lane) axis so every shifted HW-long slice is
    # in-bounds and the DMA tile is a dense multiple of 128 lanes.
    max_shift = (KH - 1) * W + (KW - 1)
    HW_pad = pl.cdiv(HW + max_shift, 128) * 128

    x_flat = jnp.pad(x.reshape(N, Cin, HW),
                     ((0, 0), (0, 0), (0, HW_pad - HW)))
    w_flat = w_oihw.reshape(-1)  # flat OIHW scalar table for SMEM

    def kernel(w_ref, b_ref, x_ref, o_ref):
        # w_ref: SMEM (Cout*Cin*KH*KW,), b_ref: SMEM (Cout,)
        # x_ref: VMEM (1, Cin, HW_pad), o_ref: VMEM (1, Cout, HW)

        # One full lane-dense output frame per output channel, bias-initialized.
        accs = [jnp.zeros((1, HW), dtype=jnp.float32) + b_ref[co]
                for co in range(Cout)]

        # 27 unique shifted patches, each loaded once and reused for all Cout.
        for ci in range(Cin):
            for dy in range(KH):
                for dx in range(KW):
                    s = dy * W + dx
                    row = x_ref[0, ci:ci + 1, s:s + HW]   # (1, HW) lane-dense
                    for co in range(Cout):
                        wval = w_ref[((co * Cin + ci) * KH + dy) * KW + dx]
                        accs[co] = accs[co] + row * wval

        # Batched epilogue: independent tanh chains on full 256-lane rows,
        # followed by unmasked lane-dense stores.
        for co in range(Cout):
            out = jnp.tanh(jnp.tanh(jnp.tanh(accs[co])))
            o_ref[0, co:co + 1, :] = out.astype(o_ref.dtype)

    out_flat = pl.pallas_call(
        kernel,
        out_shape=jax.ShapeDtypeStruct((N, Cout, HW), x.dtype),
        grid=(N,),
        in_specs=[
            pl.BlockSpec(memory_space=pltpu.MemorySpace.SMEM),   # weights
            pl.BlockSpec(memory_space=pltpu.MemorySpace.SMEM),   # bias
            pl.BlockSpec((1, Cin, HW_pad), lambda n: (n, 0, 0)),
        ],
        out_specs=pl.BlockSpec((1, Cout, HW), lambda n: (n, 0, 0)),
        compiler_params=pltpu.CompilerParams(
            dimension_semantics=("parallel",)),
    )(w_flat, bias, x_flat)

    # Slice the valid conv region back out of the full HxW frame.
    return out_flat.reshape(N, Cout, H, W)[:, :, :Ho, :Wo]


if __name__ == "__main__":
    # Small shapes consistent with the module: Conv2d(3, 3, 3), VALID padding.
    N, Cin, H, W = 2, 3, 16, 16
    Cout = 3

    key = jax.random.PRNGKey(0)
    kx, kw, kb = jax.random.split(key, 3)
    x = jax.random.normal(kx, (N, Cin, H, W), dtype=jnp.float32)
    # Deterministic parameter init (PyTorch-style uniform fan-in bound).
    bound = 1.0 / (Cin * KH * KW) ** 0.5
    w = jax.random.uniform(kw, (Cout, Cin, KH, KW), jnp.float32, -bound, bound)
    b = jax.random.uniform(kb, (Cout,), jnp.float32, -bound, bound)

    out = jax.block_until_ready(model_tanh_forward(x, w, b))

    # Cross-check against a pure-JAX reference.
    ref = jax.lax.conv_general_dilated(
        x, w, window_strides=(1, 1), padding="VALID",
        dimension_numbers=("NCHW", "OIHW", "NCHW"))
    ref = jnp.tanh(jnp.tanh(jnp.tanh(ref + b[None, :, None, None])))
    assert out.shape == (N, Cout, H - 2, W - 2)
    assert jnp.allclose(out, ref, atol=1e-5, rtol=1e-5)

    print("KERNEL_OK")
</pallas_src>

<mosaic_0001>
module attributes {stable_mosaic.version = 11 : i64} {
  func.func @kernel(%arg0: i32, %arg1: memref<81xf32, #tpu.memory_space<smem>>, %arg2: memref<3xf32, #tpu.memory_space<smem>>, %arg3: memref<1x3x384xf32, #tpu.memory_space<vmem>>, %arg4: memref<1x3x256xf32, #tpu.memory_space<vmem>>) attributes {dimension_semantics = [#tpu.dimension_semantics<parallel>], iteration_bounds = array<i64: 2>, scalar_prefetch = 0 : i64, scratch_operands = 0 : i64, tpu.core_type = #tpu.core_type<tc>, window_params = [{transform_indices = @transform_0, window_bounds = array<i64: 81>}, {transform_indices = @transform_1, window_bounds = array<i64: 3>}, {transform_indices = @transform_2, window_bounds = array<i64: 1, 3, 384>}, {transform_indices = @transform_3, window_bounds = array<i64: 1, 3, 256>}]} {
    %cst = arith.constant 0.000000e+00 : f32
    %0 = vector.broadcast %cst : f32 to vector<1x256xf32>
    %c0 = arith.constant 0 : index
    %1 = memref.load %arg2[%c0] : memref<3xf32, #tpu.memory_space<smem>>
    %2 = vector.broadcast %1 : f32 to vector<1x256xf32>
    %3 = arith.addf %0, %2 : vector<1x256xf32>
    %cst_0 = arith.constant 0.000000e+00 : f32
    %4 = vector.broadcast %cst_0 : f32 to vector<1x256xf32>
    %c1 = arith.constant 1 : index
    %5 = memref.load %arg2[%c1] : memref<3xf32, #tpu.memory_space<smem>>
    %6 = vector.broadcast %5 : f32 to vector<1x256xf32>
    %7 = arith.addf %4, %6 : vector<1x256xf32>
    %cst_1 = arith.constant 0.000000e+00 : f32
    %8 = vector.broadcast %cst_1 : f32 to vector<1x256xf32>
    %c2 = arith.constant 2 : index
    %9 = memref.load %arg2[%c2] : memref<3xf32, #tpu.memory_space<smem>>
    %10 = vector.broadcast %9 : f32 to vector<1x256xf32>
    %11 = arith.addf %8, %10 : vector<1x256xf32>
    %c0_2 = arith.constant 0 : index
    %c0_3 = arith.constant 0 : index
    %c0_4 = arith.constant 0 : index
    %12 = vector.load %arg3[%c0_2, %c0_3, %c0_4] : memref<1x3x384xf32, #tpu.memory_space<vmem>>, vector<1x1x256xf32>
    %13 = vector.shape_cast %12 : vector<1x1x256xf32> to vector<1x256xf32>
    %c0_5 = arith.constant 0 : index
    %14 = memref.load %arg1[%c0_5] : memref<81xf32, #tpu.memory_space<smem>>
    %15 = vector.broadcast %14 : f32 to vector<1x256xf32>
    %16 = arith.mulf %13, %15 : vector<1x256xf32>
    %17 = arith.addf %3, %16 : vector<1x256xf32>
    %c27 = arith.constant 27 : index
    %18 = memref.load %arg1[%c27] : memref<81xf32, #tpu.memory_space<smem>>
    %19 = vector.broadcast %18 : f32 to vector<1x256xf32>
    %20 = arith.mulf %13, %19 : vector<1x256xf32>
    %21 = arith.addf %7, %20 : vector<1x256xf32>
    %c54 = arith.constant 54 : index
    %22 = memref.load %arg1[%c54] : memref<81xf32, #tpu.memory_space<smem>>
    %23 = vector.broadcast %22 : f32 to vector<1x256xf32>
    %24 = arith.mulf %13, %23 : vector<1x256xf32>
    %25 = arith.addf %11, %24 : vector<1x256xf32>
    %c0_6 = arith.constant 0 : index
    %c0_7 = arith.constant 0 : index
    %c1_8 = arith.constant 1 : index
    %26 = vector.load %arg3[%c0_6, %c0_7, %c1_8] : memref<1x3x384xf32, #tpu.memory_space<vmem>>, vector<1x1x256xf32>
    %27 = vector.shape_cast %26 : vector<1x1x256xf32> to vector<1x256xf32>
    %c1_9 = arith.constant 1 : index
    %28 = memref.load %arg1[%c1_9] : memref<81xf32, #tpu.memory_space<smem>>
    %29 = vector.broadcast %28 : f32 to vector<1x256xf32>
    %30 = arith.mulf %27, %29 : vector<1x256xf32>
    %31 = arith.addf %17, %30 : vector<1x256xf32>
    %c28 = arith.constant 28 : index
    %32 = memref.load %arg1[%c28] : memref<81xf32, #tpu.memory_space<smem>>
    %33 = vector.broadcast %32 : f32 to vector<1x256xf32>
    %34 = arith.mulf %27, %33 : vector<1x256xf32>
    %35 = arith.addf %21, %34 : vector<1x256xf32>
    %c55 = arith.constant 55 : index
    %36 = memref.load %arg1[%c55] : memref<81xf32, #tpu.memory_space<smem>>
    %37 = vector.broadcast %36 : f32 to vector<1x256xf32>
    %38 = arith.mulf %27, %37 : vector<1x256xf32>
    %39 = arith.addf %25, %38 : vector<1x256xf32>
    %c0_10 = arith.constant 0 : index
    %c0_11 = arith.constant 0 : index
    %c2_12 = arith.constant 2 : index
    %40 = vector.load %arg3[%c0_10, %c0_11, %c2_12] : memref<1x3x384xf32, #tpu.memory_space<vmem>>, vector<1x1x256xf32>
    %41 = vector.shape_cast %40 : vector<1x1x256xf32> to vector<1x256xf32>
    %c2_13 = arith.constant 2 : index
    %42 = memref.load %arg1[%c2_13] : memref<81xf32, #tpu.memory_space<smem>>
    %43 = vector.broadcast %42 : f32 to vector<1x256xf32>
    %44 = arith.mulf %41, %43 : vector<1x256xf32>
    %45 = arith.addf %31, %44 : vector<1x256xf32>
    %c29 = arith.constant 29 : index
    %46 = memref.load %arg1[%c29] : memref<81xf32, #tpu.memory_space<smem>>
    %47 = vector.broadcast %46 : f32 to vector<1x256xf32>
    %48 = arith.mulf %41, %47 : vector<1x256xf32>
    %49 = arith.addf %35, %48 : vector<1x256xf32>
    %c56 = arith.constant 56 : index
    %50 = memref.load %arg1[%c56] : memref<81xf32, #tpu.memory_space<smem>>
    %51 = vector.broadcast %50 : f32 to vector<1x256xf32>
    %52 = arith.mulf %41, %51 : vector<1x256xf32>
    %53 = arith.addf %39, %52 : vector<1x256xf32>
    %c0_14 = arith.constant 0 : index
    %c0_15 = arith.constant 0 : index
    %c16 = arith.constant 16 : index
    %54 = vector.load %arg3[%c0_14, %c0_15, %c16] : memref<1x3x384xf32, #tpu.memory_space<vmem>>, vector<1x1x256xf32>
    %55 = vector.shape_cast %54 : vector<1x1x256xf32> to vector<1x256xf32>
    %c3 = arith.constant 3 : index
    %56 = memref.load %arg1[%c3] : memref<81xf32, #tpu.memory_space<smem>>
    %57 = vector.broadcast %56 : f32 to vector<1x256xf32>
    %58 = arith.mulf %55, %57 : vector<1x256xf32>
    %59 = arith.addf %45, %58 : vector<1x256xf32>
    %c30 = arith.constant 30 : index
    %60 = memref.load %arg1[%c30] : memref<81xf32, #tpu.memory_space<smem>>
    %61 = vector.broadcast %60 : f32 to vector<1x256xf32>
    %62 = arith.mulf %55, %61 : vector<1x256xf32>
    %63 = arith.addf %49, %62 : vector<1x256xf32>
    %c57 = arith.constant 57 : index
    %64 = memref.load %arg1[%c57] : memref<81xf32, #tpu.memory_space<smem>>
    %65 = vector.broadcast %64 : f32 to vector<1x256xf32>
    %66 = arith.mulf %55, %65 : vector<1x256xf32>
    %67 = arith.addf %53, %66 : vector<1x256xf32>
    %c0_16 = arith.constant 0 : index
    %c0_17 = arith.constant 0 : index
    %c17 = arith.constant 17 : index
    %68 = vector.load %arg3[%c0_16, %c0_17, %c17] : memref<1x3x384xf32, #tpu.memory_space<vmem>>, vector<1x1x256xf32>
    %69 = vector.shape_cast %68 : vector<1x1x256xf32> to vector<1x256xf32>
    %c4 = arith.constant 4 : index
    %70 = memref.load %arg1[%c4] : memref<81xf32, #tpu.memory_space<smem>>
    %71 = vector.broadcast %70 : f32 to vector<1x256xf32>
    %72 = arith.mulf %69, %71 : vector<1x256xf32>
    %73 = arith.addf %59, %72 : vector<1x256xf32>
    %c31 = arith.constant 31 : index
    %74 = memref.load %arg1[%c31] : memref<81xf32, #tpu.memory_space<smem>>
    %75 = vector.broadcast %74 : f32 to vector<1x256xf32>
    %76 = arith.mulf %69, %75 : vector<1x256xf32>
    %77 = arith.addf %63, %76 : vector<1x256xf32>
    %c58 = arith.constant 58 : index
    %78 = memref.load %arg1[%c58] : memref<81xf32, #tpu.memory_space<smem>>
    %79 = vector.broadcast %78 : f32 to vector<1x256xf32>
    %80 = arith.mulf %69, %79 : vector<1x256xf32>
    %81 = arith.addf %67, %80 : vector<1x256xf32>
    %c0_18 = arith.constant 0 : index
    %c0_19 = arith.constant 0 : index
    %c18 = arith.constant 18 : index
    %82 = vector.load %arg3[%c0_18, %c0_19, %c18] : memref<1x3x384xf32, #tpu.memory_space<vmem>>, vector<1x1x256xf32>
    %83 = vector.shape_cast %82 : vector<1x1x256xf32> to vector<1x256xf32>
    %c5 = arith.constant 5 : index
    %84 = memref.load %arg1[%c5] : memref<81xf32, #tpu.memory_space<smem>>
    %85 = vector.broadcast %84 : f32 to vector<1x256xf32>
    %86 = arith.mulf %83, %85 : vector<1x256xf32>
    %87 = arith.addf %73, %86 : vector<1x256xf32>
    %c32 = arith.constant 32 : index
    %88 = memref.load %arg1[%c32] : memref<81xf32, #tpu.memory_space<smem>>
    %89 = vector.broadcast %88 : f32 to vector<1x256xf32>
    %90 = arith.mulf %83, %89 : vector<1x256xf32>
    %91 = arith.addf %77, %90 : vector<1x256xf32>
    %c59 = arith.constant 59 : index
    %92 = memref.load %arg1[%c59] : memref<81xf32, #tpu.memory_space<smem>>
    %93 = vector.broadcast %92 : f32 to vector<1x256xf32>
    %94 = arith.mulf %83, %93 : vector<1x256xf32>
    %95 = arith.addf %81, %94 : vector<1x256xf32>
    %c0_20 = arith.constant 0 : index
    %c0_21 = arith.constant 0 : index
    %c32_22 = arith.constant 32 : index
    %96 = vector.load %arg3[%c0_20, %c0_21, %c32_22] : memref<1x3x384xf32, #tpu.memory_space<vmem>>, vector<1x1x256xf32>
    %97 = vector.shape_cast %96 : vector<1x1x256xf32> to vector<1x256xf32>
    %c6 = arith.constant 6 : index
    %98 = memref.load %arg1[%c6] : memref<81xf32, #tpu.memory_space<smem>>
    %99 = vector.broadcast %98 : f32 to vector<1x256xf32>
    %100 = arith.mulf %97, %99 : vector<1x256xf32>
    %101 = arith.addf %87, %100 : vector<1x256xf32>
    %c33 = arith.constant 33 : index
    %102 = memref.load %arg1[%c33] : memref<81xf32, #tpu.memory_space<smem>>
    %103 = vector.broadcast %102 : f32 to vector<1x256xf32>
    %104 = arith.mulf %97, %103 : vector<1x256xf32>
    %105 = arith.addf %91, %104 : vector<1x256xf32>
    %c60 = arith.constant 60 : index
    %106 = memref.load %arg1[%c60] : memref<81xf32, #tpu.memory_space<smem>>
    %107 = vector.broadcast %106 : f32 to vector<1x256xf32>
    %108 = arith.mulf %97, %107 : vector<1x256xf32>
    %109 = arith.addf %95, %108 : vector<1x256xf32>
    %c0_23 = arith.constant 0 : index
    %c0_24 = arith.constant 0 : index
    %c33_25 = arith.constant 33 : index
    %110 = vector.load %arg3[%c0_23, %c0_24, %c33_25] : memref<1x3x384xf32, #tpu.memory_space<vmem>>, vector<1x1x256xf32>
    %111 = vector.shape_cast %110 : vector<1x1x256xf32> to vector<1x256xf32>
    %c7 = arith.constant 7 : index
    %112 = memref.load %arg1[%c7] : memref<81xf32, #tpu.memory_space<smem>>
    %113 = vector.broadcast %112 : f32 to vector<1x256xf32>
    %114 = arith.mulf %111, %113 : vector<1x256xf32>
    %115 = arith.addf %101, %114 : vector<1x256xf32>
    %c34 = arith.constant 34 : index
    %116 = memref.load %arg1[%c34] : memref<81xf32, #tpu.memory_space<smem>>
    %117 = vector.broadcast %116 : f32 to vector<1x256xf32>
    %118 = arith.mulf %111, %117 : vector<1x256xf32>
    %119 = arith.addf %105, %118 : vector<1x256xf32>
    %c61 = arith.constant 61 : index
    %120 = memref.load %arg1[%c61] : memref<81xf32, #tpu.memory_space<smem>>
    %121 = vector.broadcast %120 : f32 to vector<1x256xf32>
    %122 = arith.mulf %111, %121 : vector<1x256xf32>
    %123 = arith.addf %109, %122 : vector<1x256xf32>
    %c0_26 = arith.constant 0 : index
    %c0_27 = arith.constant 0 : index
    %c34_28 = arith.constant 34 : index
    %124 = vector.load %arg3[%c0_26, %c0_27, %c34_28] : memref<1x3x384xf32, #tpu.memory_space<vmem>>, vector<1x1x256xf32>
    %125 = vector.shape_cast %124 : vector<1x1x256xf32> to vector<1x256xf32>
    %c8 = arith.constant 8 : index
    %126 = memref.load %arg1[%c8] : memref<81xf32, #tpu.memory_space<smem>>
    %127 = vector.broadcast %126 : f32 to vector<1x256xf32>
    %128 = arith.mulf %125, %127 : vector<1x256xf32>
    %129 = arith.addf %115, %128 : vector<1x256xf32>
    %c35 = arith.constant 35 : index
    %130 = memref.load %arg1[%c35] : memref<81xf32, #tpu.memory_space<smem>>
    %131 = vector.broadcast %130 : f32 to vector<1x256xf32>
    %132 = arith.mulf %125, %131 : vector<1x256xf32>
    %133 = arith.addf %119, %132 : vector<1x256xf32>
    %c62 = arith.constant 62 : index
    %134 = memref.load %arg1[%c62] : memref<81xf32, #tpu.memory_space<smem>>
    %135 = vector.broadcast %134 : f32 to vector<1x256xf32>
    %136 = arith.mulf %125, %135 : vector<1x256xf32>
    %137 = arith.addf %123, %136 : vector<1x256xf32>
    %c0_29 = arith.constant 0 : index
    %c1_30 = arith.constant 1 : index
    %c0_31 = arith.constant 0 : index
    %138 = vector.load %arg3[%c0_29, %c1_30, %c0_31] : memref<1x3x384xf32, #tpu.memory_space<vmem>>, vector<1x1x256xf32>
    %139 = vector.shape_cast %138 : vector<1x1x256xf32> to vector<1x256xf32>
    %c9 = arith.constant 9 : index
    %140 = memref.load %arg1[%c9] : memref<81xf32, #tpu.memory_space<smem>>
    %141 = vector.broadcast %140 : f32 to vector<1x256xf32>
    %142 = arith.mulf %139, %141 : vector<1x256xf32>
    %143 = arith.addf %129, %142 : vector<1x256xf32>
    %c36 = arith.constant 36 : index
    %144 = memref.load %arg1[%c36] : memref<81xf32, #tpu.memory_space<smem>>
    %145 = vector.broadcast %144 : f32 to vector<1x256xf32>
    %146 = arith.mulf %139, %145 : vector<1x256xf32>
    %147 = arith.addf %133, %146 : vector<1x256xf32>
    %c63 = arith.constant 63 : index
    %148 = memref.load %arg1[%c63] : memref<81xf32, #tpu.memory_space<smem>>
    %149 = vector.broadcast %148 : f32 to vector<1x256xf32>
    %150 = arith.mulf %139, %149 : vector<1x256xf32>
    %151 = arith.addf %137, %150 : vector<1x256xf32>
    %c0_32 = arith.constant 0 : index
    %c1_33 = arith.constant 1 : index
    %c1_34 = arith.constant 1 : index
    %152 = vector.load %arg3[%c0_32, %c1_33, %c1_34] : memref<1x3x384xf32, #tpu.memory_space<vmem>>, vector<1x1x256xf32>
    %153 = vector.shape_cast %152 : vector<1x1x256xf32> to vector<1x256xf32>
    %c10 = arith.constant 10 : index
    %154 = memref.load %arg1[%c10] : memref<81xf32, #tpu.memory_space<smem>>
    %155 = vector.broadcast %154 : f32 to vector<1x256xf32>
    %156 = arith.mulf %153, %155 : vector<1x256xf32>
    %157 = arith.addf %143, %156 : vector<1x256xf32>
    %c37 = arith.constant 37 : index
    %158 = memref.load %arg1[%c37] : memref<81xf32, #tpu.memory_space<smem>>
    %159 = vector.broadcast %158 : f32 to vector<1x256xf32>
    %160 = arith.mulf %153, %159 : vector<1x256xf32>
    %161 = arith.addf %147, %160 : vector<1x256xf32>
    %c64 = arith.constant 64 : index
    %162 = memref.load %arg1[%c64] : memref<81xf32, #tpu.memory_space<smem>>
    %163 = vector.broadcast %162 : f32 to vector<1x256xf32>
    %164 = arith.mulf %153, %163 : vector<1x256xf32>
    %165 = arith.addf %151, %164 : vector<1x256xf32>
    %c0_35 = arith.constant 0 : index
    %c1_36 = arith.constant 1 : index
    %c2_37 = arith.constant 2 : index
    %166 = vector.load %arg3[%c0_35, %c1_36, %c2_37] : memref<1x3x384xf32, #tpu.memory_space<vmem>>, vector<1x1x256xf32>
    %167 = vector.shape_cast %166 : vector<1x1x256xf32> to vector<1x256xf32>
    %c11 = arith.constant 11 : index
    %168 = memref.load %arg1[%c11] : memref<81xf32, #tpu.memory_space<smem>>
    %169 = vector.broadcast %168 : f32 to vector<1x256xf32>
    %170 = arith.mulf %167, %169 : vector<1x256xf32>
    %171 = arith.addf %157, %170 : vector<1x256xf32>
    %c38 = arith.constant 38 : index
    %172 = memref.load %arg1[%c38] : memref<81xf32, #tpu.memory_space<smem>>
    %173 = vector.broadcast %172 : f32 to vector<1x256xf32>
    %174 = arith.mulf %167, %173 : vector<1x256xf32>
    %175 = arith.addf %161, %174 : vector<1x256xf32>
    %c65 = arith.constant 65 : index
    %176 = memref.load %arg1[%c65] : memref<81xf32, #tpu.memory_space<smem>>
    %177 = vector.broadcast %176 : f32 to vector<1x256xf32>
    %178 = arith.mulf %167, %177 : vector<1x256xf32>
    %179 = arith.addf %165, %178 : vector<1x256xf32>
    %c0_38 = arith.constant 0 : index
    %c1_39 = arith.constant 1 : index
    %c16_40 = arith.constant 16 : index
    %180 = vector.load %arg3[%c0_38, %c1_39, %c16_40] : memref<1x3x384xf32, #tpu.memory_space<vmem>>, vector<1x1x256xf32>
    %181 = vector.shape_cast %180 : vector<1x1x256xf32> to vector<1x256xf32>
    %c12 = arith.constant 12 : index
    %182 = memref.load %arg1[%c12] : memref<81xf32, #tpu.memory_space<smem>>
    %183 = vector.broadcast %182 : f32 to vector<1x256xf32>
    %184 = arith.mulf %181, %183 : vector<1x256xf32>
    %185 = arith.addf %171, %184 : vector<1x256xf32>
    %c39 = arith.constant 39 : index
    %186 = memref.load %arg1[%c39] : memref<81xf32, #tpu.memory_space<smem>>
    %187 = vector.broadcast %186 : f32 to vector<1x256xf32>
    %188 = arith.mulf %181, %187 : vector<1x256xf32>
    %189 = arith.addf %175, %188 : vector<1x256xf32>
    %c66 = arith.constant 66 : index
    %190 = memref.load %arg1[%c66] : memref<81xf32, #tpu.memory_space<smem>>
    %191 = vector.broadcast %190 : f32 to vector<1x256xf32>
    %192 = arith.mulf %181, %191 : vector<1x256xf32>
    %193 = arith.addf %179, %192 : vector<1x256xf32>
    %c0_41 = arith.constant 0 : index
    %c1_42 = arith.constant 1 : index
    %c17_43 = arith.constant 17 : index
    %194 = vector.load %arg3[%c0_41, %c1_42, %c17_43] : memref<1x3x384xf32, #tpu.memory_space<vmem>>, vector<1x1x256xf32>
    %195 = vector.shape_cast %194 : vector<1x1x256xf32> to vector<1x256xf32>
    %c13 = arith.constant 13 : index
    %196 = memref.load %arg1[%c13] : memref<81xf32, #tpu.memory_space<smem>>
    %197 = vector.broadcast %196 : f32 to vector<1x256xf32>
    %198 = arith.mulf %195, %197 : vector<1x256xf32>
    %199 = arith.addf %185, %198 : vector<1x256xf32>
    %c40 = arith.constant 40 : index
    %200 = memref.load %arg1[%c40] : memref<81xf32, #tpu.memory_space<smem>>
    %201 = vector.broadcast %200 : f32 to vector<1x256xf32>
    %202 = arith.mulf %195, %201 : vector<1x256xf32>
    %203 = arith.addf %189, %202 : vector<1x256xf32>
    %c67 = arith.constant 67 : index
    %204 = memref.load %arg1[%c67] : memref<81xf32, #tpu.memory_space<smem>>
    %205 = vector.broadcast %204 : f32 to vector<1x256xf32>
    %206 = arith.mulf %195, %205 : vector<1x256xf32>
    %207 = arith.addf %193, %206 : vector<1x256xf32>
    %c0_44 = arith.constant 0 : index
    %c1_45 = arith.constant 1 : index
    %c18_46 = arith.constant 18 : index
    %208 = vector.load %arg3[%c0_44, %c1_45, %c18_46] : memref<1x3x384xf32, #tpu.memory_space<vmem>>, vector<1x1x256xf32>
    %209 = vector.shape_cast %208 : vector<1x1x256xf32> to vector<1x256xf32>
    %c14 = arith.constant 14 : index
    %210 = memref.load %arg1[%c14] : memref<81xf32, #tpu.memory_space<smem>>
    %211 = vector.broadcast %210 : f32 to vector<1x256xf32>
    %212 = arith.mulf %209, %211 : vector<1x256xf32>
    %213 = arith.addf %199, %212 : vector<1x256xf32>
    %c41 = arith.constant 41 : index
    %214 = memref.load %arg1[%c41] : memref<81xf32, #tpu.memory_space<smem>>
    %215 = vector.broadcast %214 : f32 to vector<1x256xf32>
    %216 = arith.mulf %209, %215 : vector<1x256xf32>
    %217 = arith.addf %203, %216 : vector<1x256xf32>
    %c68 = arith.constant 68 : index
    %218 = memref.load %arg1[%c68] : memref<81xf32, #tpu.memory_space<smem>>
    %219 = vector.broadcast %218 : f32 to vector<1x256xf32>
    %220 = arith.mulf %209, %219 : vector<1x256xf32>
    %221 = arith.addf %207, %220 : vector<1x256xf32>
    %c0_47 = arith.constant 0 : index
    %c1_48 = arith.constant 1 : index
    %c32_49 = arith.constant 32 : index
    %222 = vector.load %arg3[%c0_47, %c1_48, %c32_49] : memref<1x3x384xf32, #tpu.memory_space<vmem>>, vector<1x1x256xf32>
    %223 = vector.shape_cast %222 : vector<1x1x256xf32> to vector<1x256xf32>
    %c15 = arith.constant 15 : index
    %224 = memref.load %arg1[%c15] : memref<81xf32, #tpu.memory_space<smem>>
    %225 = vector.broadcast %224 : f32 to vector<1x256xf32>
    %226 = arith.mulf %223, %225 : vector<1x256xf32>
    %227 = arith.addf %213, %226 : vector<1x256xf32>
    %c42 = arith.constant 42 : index
    %228 = memref.load %arg1[%c42] : memref<81xf32, #tpu.memory_space<smem>>
    %229 = vector.broadcast %228 : f32 to vector<1x256xf32>
    %230 = arith.mulf %223, %229 : vector<1x256xf32>
    %231 = arith.addf %217, %230 : vector<1x256xf32>
    %c69 = arith.constant 69 : index
    %232 = memref.load %arg1[%c69] : memref<81xf32, #tpu.memory_space<smem>>
    %233 = vector.broadcast %232 : f32 to vector<1x256xf32>
    %234 = arith.mulf %223, %233 : vector<1x256xf32>
    %235 = arith.addf %221, %234 : vector<1x256xf32>
    %c0_50 = arith.constant 0 : index
    %c1_51 = arith.constant 1 : index
    %c33_52 = arith.constant 33 : index
    %236 = vector.load %arg3[%c0_50, %c1_51, %c33_52] : memref<1x3x384xf32, #tpu.memory_space<vmem>>, vector<1x1x256xf32>
    %237 = vector.shape_cast %236 : vector<1x1x256xf32> to vector<1x256xf32>
    %c16_53 = arith.constant 16 : index
    %238 = memref.load %arg1[%c16_53] : memref<81xf32, #tpu.memory_space<smem>>
    %239 = vector.broadcast %238 : f32 to vector<1x256xf32>
    %240 = arith.mulf %237, %239 : vector<1x256xf32>
    %241 = arith.addf %227, %240 : vector<1x256xf32>
    %c43 = arith.constant 43 : index
    %242 = memref.load %arg1[%c43] : memref<81xf32, #tpu.memory_space<smem>>
    %243 = vector.broadcast %242 : f32 to vector<1x256xf32>
    %244 = arith.mulf %237, %243 : vector<1x256xf32>
    %245 = arith.addf %231, %244 : vector<1x256xf32>
    %c70 = arith.constant 70 : index
    %246 = memref.load %arg1[%c70] : memref<81xf32, #tpu.memory_space<smem>>
    %247 = vector.broadcast %246 : f32 to vector<1x256xf32>
    %248 = arith.mulf %237, %247 : vector<1x256xf32>
    %249 = arith.addf %235, %248 : vector<1x256xf32>
    %c0_54 = arith.constant 0 : index
    %c1_55 = arith.constant 1 : index
    %c34_56 = arith.constant 34 : index
    %250 = vector.load %arg3[%c0_54, %c1_55, %c34_56] : memref<1x3x384xf32, #tpu.memory_space<vmem>>, vector<1x1x256xf32>
    %251 = vector.shape_cast %250 : vector<1x1x256xf32> to vector<1x256xf32>
    %c17_57 = arith.constant 17 : index
    %252 = memref.load %arg1[%c17_57] : memref<81xf32, #tpu.memory_space<smem>>
    %253 = vector.broadcast %252 : f32 to vector<1x256xf32>
    %254 = arith.mulf %251, %253 : vector<1x256xf32>
    %255 = arith.addf %241, %254 : vector<1x256xf32>
    %c44 = arith.constant 44 : index
    %256 = memref.load %arg1[%c44] : memref<81xf32, #tpu.memory_space<smem>>
    %257 = vector.broadcast %256 : f32 to vector<1x256xf32>
    %258 = arith.mulf %251, %257 : vector<1x256xf32>
    %259 = arith.addf %245, %258 : vector<1x256xf32>
    %c71 = arith.constant 71 : index
    %260 = memref.load %arg1[%c71] : memref<81xf32, #tpu.memory_space<smem>>
    %261 = vector.broadcast %260 : f32 to vector<1x256xf32>
    %262 = arith.mulf %251, %261 : vector<1x256xf32>
    %263 = arith.addf %249, %262 : vector<1x256xf32>
    %c0_58 = arith.constant 0 : index
    %c2_59 = arith.constant 2 : index
    %c0_60 = arith.constant 0 : index
    %264 = vector.load %arg3[%c0_58, %c2_59, %c0_60] : memref<1x3x384xf32, #tpu.memory_space<vmem>>, vector<1x1x256xf32>
    %265 = vector.shape_cast %264 : vector<1x1x256xf32> to vector<1x256xf32>
    %c18_61 = arith.constant 18 : index
    %266 = memref.load %arg1[%c18_61] : memref<81xf32, #tpu.memory_space<smem>>
    %267 = vector.broadcast %266 : f32 to vector<1x256xf32>
    %268 = arith.mulf %265, %267 : vector<1x256xf32>
    %269 = arith.addf %255, %268 : vector<1x256xf32>
    %c45 = arith.constant 45 : index
    %270 = memref.load %arg1[%c45] : memref<81xf32, #tpu.memory_space<smem>>
    %271 = vector.broadcast %270 : f32 to vector<1x256xf32>
    %272 = arith.mulf %265, %271 : vector<1x256xf32>
    %273 = arith.addf %259, %272 : vector<1x256xf32>
    %c72 = arith.constant 72 : index
    %274 = memref.load %arg1[%c72] : memref<81xf32, #tpu.memory_space<smem>>
    %275 = vector.broadcast %274 : f32 to vector<1x256xf32>
    %276 = arith.mulf %265, %275 : vector<1x256xf32>
    %277 = arith.addf %263, %276 : vector<1x256xf32>
    %c0_62 = arith.constant 0 : index
    %c2_63 = arith.constant 2 : index
    %c1_64 = arith.constant 1 : index
    %278 = vector.load %arg3[%c0_62, %c2_63, %c1_64] : memref<1x3x384xf32, #tpu.memory_space<vmem>>, vector<1x1x256xf32>
    %279 = vector.shape_cast %278 : vector<1x1x256xf32> to vector<1x256xf32>
    %c19 = arith.constant 19 : index
    %280 = memref.load %arg1[%c19] : memref<81xf32, #tpu.memory_space<smem>>
    %281 = vector.broadcast %280 : f32 to vector<1x256xf32>
    %282 = arith.mulf %279, %281 : vector<1x256xf32>
    %283 = arith.addf %269, %282 : vector<1x256xf32>
    %c46 = arith.constant 46 : index
    %284 = memref.load %arg1[%c46] : memref<81xf32, #tpu.memory_space<smem>>
    %285 = vector.broadcast %284 : f32 to vector<1x256xf32>
    %286 = arith.mulf %279, %285 : vector<1x256xf32>
    %287 = arith.addf %273, %286 : vector<1x256xf32>
    %c73 = arith.constant 73 : index
    %288 = memref.load %arg1[%c73] : memref<81xf32, #tpu.memory_space<smem>>
    %289 = vector.broadcast %288 : f32 to vector<1x256xf32>
    %290 = arith.mulf %279, %289 : vector<1x256xf32>
    %291 = arith.addf %277, %290 : vector<1x256xf32>
    %c0_65 = arith.constant 0 : index
    %c2_66 = arith.constant 2 : index
    %c2_67 = arith.constant 2 : index
    %292 = vector.load %arg3[%c0_65, %c2_66, %c2_67] : memref<1x3x384xf32, #tpu.memory_space<vmem>>, vector<1x1x256xf32>
    %293 = vector.shape_cast %292 : vector<1x1x256xf32> to vector<1x256xf32>
    %c20 = arith.constant 20 : index
    %294 = memref.load %arg1[%c20] : memref<81xf32, #tpu.memory_space<smem>>
    %295 = vector.broadcast %294 : f32 to vector<1x256xf32>
    %296 = arith.mulf %293, %295 : vector<1x256xf32>
    %297 = arith.addf %283, %296 : vector<1x256xf32>
    %c47 = arith.constant 47 : index
    %298 = memref.load %arg1[%c47] : memref<81xf32, #tpu.memory_space<smem>>
    %299 = vector.broadcast %298 : f32 to vector<1x256xf32>
    %300 = arith.mulf %293, %299 : vector<1x256xf32>
    %301 = arith.addf %287, %300 : vector<1x256xf32>
    %c74 = arith.constant 74 : index
    %302 = memref.load %arg1[%c74] : memref<81xf32, #tpu.memory_space<smem>>
    %303 = vector.broadcast %302 : f32 to vector<1x256xf32>
    %304 = arith.mulf %293, %303 : vector<1x256xf32>
    %305 = arith.addf %291, %304 : vector<1x256xf32>
    %c0_68 = arith.constant 0 : index
    %c2_69 = arith.constant 2 : index
    %c16_70 = arith.constant 16 : index
    %306 = vector.load %arg3[%c0_68, %c2_69, %c16_70] : memref<1x3x384xf32, #tpu.memory_space<vmem>>, vector<1x1x256xf32>
    %307 = vector.shape_cast %306 : vector<1x1x256xf32> to vector<1x256xf32>
    %c21 = arith.constant 21 : index
    %308 = memref.load %arg1[%c21] : memref<81xf32, #tpu.memory_space<smem>>
    %309 = vector.broadcast %308 : f32 to vector<1x256xf32>
    %310 = arith.mulf %307, %309 : vector<1x256xf32>
    %311 = arith.addf %297, %310 : vector<1x256xf32>
    %c48 = arith.constant 48 : index
    %312 = memref.load %arg1[%c48] : memref<81xf32, #tpu.memory_space<smem>>
    %313 = vector.broadcast %312 : f32 to vector<1x256xf32>
    %314 = arith.mulf %307, %313 : vector<1x256xf32>
    %315 = arith.addf %301, %314 : vector<1x256xf32>
    %c75 = arith.constant 75 : index
    %316 = memref.load %arg1[%c75] : memref<81xf32, #tpu.memory_space<smem>>
    %317 = vector.broadcast %316 : f32 to vector<1x256xf32>
    %318 = arith.mulf %307, %317 : vector<1x256xf32>
    %319 = arith.addf %305, %318 : vector<1x256xf32>
    %c0_71 = arith.constant 0 : index
    %c2_72 = arith.constant 2 : index
    %c17_73 = arith.constant 17 : index
    %320 = vector.load %arg3[%c0_71, %c2_72, %c17_73] : memref<1x3x384xf32, #tpu.memory_space<vmem>>, vector<1x1x256xf32>
    %321 = vector.shape_cast %320 : vector<1x1x256xf32> to vector<1x256xf32>
    %c22 = arith.constant 22 : index
    %322 = memref.load %arg1[%c22] : memref<81xf32, #tpu.memory_space<smem>>
    %323 = vector.broadcast %322 : f32 to vector<1x256xf32>
    %324 = arith.mulf %321, %323 : vector<1x256xf32>
    %325 = arith.addf %311, %324 : vector<1x256xf32>
    %c49 = arith.constant 49 : index
    %326 = memref.load %arg1[%c49] : memref<81xf32, #tpu.memory_space<smem>>
    %327 = vector.broadcast %326 : f32 to vector<1x256xf32>
    %328 = arith.mulf %321, %327 : vector<1x256xf32>
    %329 = arith.addf %315, %328 : vector<1x256xf32>
    %c76 = arith.constant 76 : index
    %330 = memref.load %arg1[%c76] : memref<81xf32, #tpu.memory_space<smem>>
    %331 = vector.broadcast %330 : f32 to vector<1x256xf32>
    %332 = arith.mulf %321, %331 : vector<1x256xf32>
    %333 = arith.addf %319, %332 : vector<1x256xf32>
    %c0_74 = arith.constant 0 : index
    %c2_75 = arith.constant 2 : index
    %c18_76 = arith.constant 18 : index
    %334 = vector.load %arg3[%c0_74, %c2_75, %c18_76] : memref<1x3x384xf32, #tpu.memory_space<vmem>>, vector<1x1x256xf32>
    %335 = vector.shape_cast %334 : vector<1x1x256xf32> to vector<1x256xf32>
    %c23 = arith.constant 23 : index
    %336 = memref.load %arg1[%c23] : memref<81xf32, #tpu.memory_space<smem>>
    %337 = vector.broadcast %336 : f32 to vector<1x256xf32>
    %338 = arith.mulf %335, %337 : vector<1x256xf32>
    %339 = arith.addf %325, %338 : vector<1x256xf32>
    %c50 = arith.constant 50 : index
    %340 = memref.load %arg1[%c50] : memref<81xf32, #tpu.memory_space<smem>>
    %341 = vector.broadcast %340 : f32 to vector<1x256xf32>
    %342 = arith.mulf %335, %341 : vector<1x256xf32>
    %343 = arith.addf %329, %342 : vector<1x256xf32>
    %c77 = arith.constant 77 : index
    %344 = memref.load %arg1[%c77] : memref<81xf32, #tpu.memory_space<smem>>
    %345 = vector.broadcast %344 : f32 to vector<1x256xf32>
    %346 = arith.mulf %335, %345 : vector<1x256xf32>
    %347 = arith.addf %333, %346 : vector<1x256xf32>
    %c0_77 = arith.constant 0 : index
    %c2_78 = arith.constant 2 : index
    %c32_79 = arith.constant 32 : index
    %348 = vector.load %arg3[%c0_77, %c2_78, %c32_79] : memref<1x3x384xf32, #tpu.memory_space<vmem>>, vector<1x1x256xf32>
    %349 = vector.shape_cast %348 : vector<1x1x256xf32> to vector<1x256xf32>
    %c24 = arith.constant 24 : index
    %350 = memref.load %arg1[%c24] : memref<81xf32, #tpu.memory_space<smem>>
    %351 = vector.broadcast %350 : f32 to vector<1x256xf32>
    %352 = arith.mulf %349, %351 : vector<1x256xf32>
    %353 = arith.addf %339, %352 : vector<1x256xf32>
    %c51 = arith.constant 51 : index
    %354 = memref.load %arg1[%c51] : memref<81xf32, #tpu.memory_space<smem>>
    %355 = vector.broadcast %354 : f32 to vector<1x256xf32>
    %356 = arith.mulf %349, %355 : vector<1x256xf32>
    %357 = arith.addf %343, %356 : vector<1x256xf32>
    %c78 = arith.constant 78 : index
    %358 = memref.load %arg1[%c78] : memref<81xf32, #tpu.memory_space<smem>>
    %359 = vector.broadcast %358 : f32 to vector<1x256xf32>
    %360 = arith.mulf %349, %359 : vector<1x256xf32>
    %361 = arith.addf %347, %360 : vector<1x256xf32>
    %c0_80 = arith.constant 0 : index
    %c2_81 = arith.constant 2 : index
    %c33_82 = arith.constant 33 : index
    %362 = vector.load %arg3[%c0_80, %c2_81, %c33_82] : memref<1x3x384xf32, #tpu.memory_space<vmem>>, vector<1x1x256xf32>
    %363 = vector.shape_cast %362 : vector<1x1x256xf32> to vector<1x256xf32>
    %c25 = arith.constant 25 : index
    %364 = memref.load %arg1[%c25] : memref<81xf32, #tpu.memory_space<smem>>
    %365 = vector.broadcast %364 : f32 to vector<1x256xf32>
    %366 = arith.mulf %363, %365 : vector<1x256xf32>
    %367 = arith.addf %353, %366 : vector<1x256xf32>
    %c52 = arith.constant 52 : index
    %368 = memref.load %arg1[%c52] : memref<81xf32, #tpu.memory_space<smem>>
    %369 = vector.broadcast %368 : f32 to vector<1x256xf32>
    %370 = arith.mulf %363, %369 : vector<1x256xf32>
    %371 = arith.addf %357, %370 : vector<1x256xf32>
    %c79 = arith.constant 79 : index
    %372 = memref.load %arg1[%c79] : memref<81xf32, #tpu.memory_space<smem>>
    %373 = vector.broadcast %372 : f32 to vector<1x256xf32>
    %374 = arith.mulf %363, %373 : vector<1x256xf32>
    %375 = arith.addf %361, %374 : vector<1x256xf32>
    %c0_83 = arith.constant 0 : index
    %c2_84 = arith.constant 2 : index
    %c34_85 = arith.constant 34 : index
    %376 = vector.load %arg3[%c0_83, %c2_84, %c34_85] : memref<1x3x384xf32, #tpu.memory_space<vmem>>, vector<1x1x256xf32>
    %377 = vector.shape_cast %376 : vector<1x1x256xf32> to vector<1x256xf32>
    %c26 = arith.constant 26 : index
    %378 = memref.load %arg1[%c26] : memref<81xf32, #tpu.memory_space<smem>>
    %379 = vector.broadcast %378 : f32 to vector<1x256xf32>
    %380 = arith.mulf %377, %379 : vector<1x256xf32>
    %381 = arith.addf %367, %380 : vector<1x256xf32>
    %c53 = arith.constant 53 : index
    %382 = memref.load %arg1[%c53] : memref<81xf32, #tpu.memory_space<smem>>
    %383 = vector.broadcast %382 : f32 to vector<1x256xf32>
    %384 = arith.mulf %377, %383 : vector<1x256xf32>
    %385 = arith.addf %371, %384 : vector<1x256xf32>
    %c80 = arith.constant 80 : index
    %386 = memref.load %arg1[%c80] : memref<81xf32, #tpu.memory_space<smem>>
    %387 = vector.broadcast %386 : f32 to vector<1x256xf32>
    %388 = arith.mulf %377, %387 : vector<1x256xf32>
    %389 = arith.addf %375, %388 : vector<1x256xf32>
    %390 = math.tanh %381 : vector<1x256xf32>
    %391 = math.tanh %390 : vector<1x256xf32>
    %392 = math.tanh %391 : vector<1x256xf32>
    %c0_86 = arith.constant 0 : index
    %c0_87 = arith.constant 0 : index
    %c0_88 = arith.constant 0 : index
    %393 = vector.load %arg4[%c0_86, %c0_87, %c0_88] : memref<1x3x256xf32, #tpu.memory_space<vmem>>, vector<1x1x256xf32>
    %394 = vector.shape_cast %393 : vector<1x1x256xf32> to vector<1x256xf32>
    %395 = vector.shape_cast %392 : vector<1x256xf32> to vector<1x1x256xf32>
    tpu.vector_store %arg4[%c0_86, %c0_87, %c0_88], %395 {strides = array<i32>} : memref<1x3x256xf32, #tpu.memory_space<vmem>>, vector<1x1x256xf32>,
    %396 = math.tanh %385 : vector<1x256xf32>
    %397 = math.tanh %396 : vector<1x256xf32>
    %398 = math.tanh %397 : vector<1x256xf32>
    %c0_89 = arith.constant 0 : index
    %c1_90 = arith.constant 1 : index
    %c0_91 = arith.constant 0 : index
    %399 = vector.load %arg4[%c0_89, %c1_90, %c0_91] : memref<1x3x256xf32, #tpu.memory_space<vmem>>, vector<1x1x256xf32>
    %400 = vector.shape_cast %399 : vector<1x1x256xf32> to vector<1x256xf32>
    %401 = vector.shape_cast %398 : vector<1x256xf32> to vector<1x1x256xf32>
    tpu.vector_store %arg4[%c0_89, %c1_90, %c0_91], %401 {strides = array<i32>} : memref<1x3x256xf32, #tpu.memory_space<vmem>>, vector<1x1x256xf32>,
    %402 = math.tanh %389 : vector<1x256xf32>
    %403 = math.tanh %402 : vector<1x256xf32>
    %404 = math.tanh %403 : vector<1x256xf32>
    %c0_92 = arith.constant 0 : index
    %c2_93 = arith.constant 2 : index
    %c0_94 = arith.constant 0 : index
    %405 = vector.load %arg4[%c0_92, %c2_93, %c0_94] : memref<1x3x256xf32, #tpu.memory_space<vmem>>, vector<1x1x256xf32>
    %406 = vector.shape_cast %405 : vector<1x1x256xf32> to vector<1x256xf32>
    %407 = vector.shape_cast %404 : vector<1x256xf32> to vector<1x1x256xf32>
    tpu.vector_store %arg4[%c0_92, %c2_93, %c0_94], %407 {strides = array<i32>} : memref<1x3x256xf32, #tpu.memory_space<vmem>>, vector<1x1x256xf32>,
    return
  }
  func.func @transform_0(%arg0: i32) -> i32 {
    %c0_i32 = arith.constant 0 : i32
    %c0_i32_0 = arith.constant 0 : i32
    return %c0_i32 : i32
  }
  func.func @transform_1(%arg0: i32) -> i32 {
    %c0_i32 = arith.constant 0 : i32
    %c0_i32_0 = arith.constant 0 : i32
    return %c0_i32 : i32
  }
  func.func @transform_2(%arg0: i32) -> (i32, i32, i32) {
    %c0_i32 = arith.constant 0 : i32
    %c0_i32_0 = arith.constant 0 : i32
    %c0_i32_1 = arith.constant 0 : i32
    return %arg0, %c0_i32, %c0_i32_0 : i32, i32, i32
  }
  func.func @transform_3(%arg0: i32) -> (i32, i32, i32) {
    %c0_i32 = arith.constant 0 : i32
    %c0_i32_0 = arith.constant 0 : i32
    %c0_i32_1 = arith.constant 0 : i32
    return %arg0, %c0_i32, %c0_i32_0 : i32, i32, i32
  }
}

</mosaic_0001>

<llo_original>
// kernel: tpu_custom_call.1
$region0: #{tpu_custom_call.1}
  #allocation0 [shape = 'u32[]', space=smem, size = 0x4, offset = 0x4, fixed_abs, tag = 'smem constant byte address 0x4 - core index']
  #allocation1 [shape = 'u32[144,128]{1,0:T(1,128)}', space=vmem, size = 0x12000, scoped, tag = 'internal scratch']
  %s0 = inlined_call_operand.vmem [shape: f32[81], index: 0, kind: input, shape index: {}]
  %s1 = inlined_call_operand.vmem [shape: f32[3], index: 1, kind: input, shape index: {}]
  %s2 = inlined_call_operand.vmem [shape: f32[2,3,384], index: 2, kind: input, shape index: {}]
  %s3 = inlined_call_operand.vmem [shape: f32[2,3,256], index: 3, kind: output, shape index: {}]
  %s4 = sld [smem:[#allocation0]]
  $region53: #{tpu_custom_call.1} parent=0
    _
  %s6 = ssub.s32 1, %s4
  %s7 = scalar_select 0, %s6, %s4
  $region1: #{tpu_custom_call.1} parent=0
    #allocation2 [shape = 'u8[512]{0}', space=smem, size = 0x200, scoped, tag = 'input window, operand 0, single buffered']
    #allocation3 [shape = 's32[2]{0}', space=sflag, size = 0x8, scoped, tag = 'scoped memory for tpu_custom_call.1']
    #allocation4 [shape = 'u8[512]{0}', space=smem, size = 0x200, scoped, tag = 'input window, operand 1, single buffered']
    #allocation5 [shape = 's32[1]{0}', space=sflag, size = 0x4, scoped, tag = 'scoped memory for tpu_custom_call.1']
    %8 = vsyncpa [#allocation3], 0
    %9 = vsyncpa [#allocation5], 0
    loop: start=0, step=1, limit=4
    $region2: #{tpu_custom_call.1} parent=1 // loop_pre_header
      _
    $region3: #{tpu_custom_call.1} parent=1 // loop_header
      %s11 = sphi 0, %s15
      %p12 = scmp.ge.s32.totalorder %s11, 4
      %s19 = sphi 0, %s19
      %s21 = sphi 0, %s19
      %s22 = sphi 0, %s21
      %s36 = sphi 0, %s22
      %s40 = sphi 0, %s40
      %s42 = sphi 0, %s40
      %s43 = sphi 0, %s42
      %s57 = sphi 0, %s43
      %s63 = sphi 0, %s65
      %s66 = sphi 0, %s63
      %s67 = sphi 0, %s66
      %s83 = sphi 0, %s67
      %s89 = sphi 0, %s91
      %s92 = sphi 0, %s89
      %s93 = sphi 0, %s92
      %s109 = sphi 0, %s93
    $region4: #{tpu_custom_call.1} parent=1 // loop_header_branch
      %14 = sbr.rel (%p12) target = $region8
    $region5: #{tpu_custom_call.1} parent=1 // loop_body
      %s16 = ssub.s32 %s11, 1
      %s17 = ssub.s32 %s11, 2
      %s18 = sadd.s32 %s11, 1
      %s20 = sadd.s32 %s19, 1
      %p23 = scmp.eq.s32.totalorder %s11, 1
      %p24 = scmp.ne.s32.totalorder %s19, %s21
      %p25 = scmp.eq.s32.totalorder %s11, 0
      %p26 = por %p24, %p25
      %p27 = scmp.ne.s32.totalorder %s19, %s21
      %p28 = scmp.eq.s32.totalorder %s16, 1
      %p29 = por %p27, %p28
      %p30 = scmp.ne.s32.totalorder %s21, %s22
      %p31 = scmp.eq.s32.totalorder %s16, 0
      %p32 = por %p30, %p31
      %p33 = scmp.ne.s32.totalorder %s21, %s22
      %p34 = scmp.eq.s32.totalorder %s17, 1
      %p35 = por %p33, %p34
      %p37 = scmp.ne.s32.totalorder %s22, %s36
      %p38 = scmp.eq.s32.totalorder %s17, 0
      %p39 = por %p37, %p38
      %s41 = sadd.s32 %s40, 1
      %p44 = scmp.eq.s32.totalorder %s11, 1
      %p45 = scmp.ne.s32.totalorder %s40, %s42
      %p46 = scmp.eq.s32.totalorder %s11, 0
      %p47 = por %p45, %p46
      %p48 = scmp.ne.s32.totalorder %s40, %s42
      %p49 = scmp.eq.s32.totalorder %s16, 1
      %p50 = por %p48, %p49
      %p51 = scmp.ne.s32.totalorder %s42, %s43
      %p52 = scmp.eq.s32.totalorder %s16, 0
      %p53 = por %p51, %p52
      %p54 = scmp.ne.s32.totalorder %s42, %s43
      %p55 = scmp.eq.s32.totalorder %s17, 1
      %p56 = por %p54, %p55
      %p58 = scmp.ne.s32.totalorder %s43, %s57
      %p59 = scmp.eq.s32.totalorder %s17, 0
      %p60 = por %p58, %p59
      %s61 = ssub.s32 %s11, %s18
      %p62 = scmp.eq.s32.totalorder %s61, 0
      %s64 = sadd.s32 %s63, 1
      %s65 = scalar_select %p62, %s63, %s64
      %p68 = pneg %p62
      %p69 = scmp.eq.s32.totalorder %s11, 1
      %p70 = por %p68, %p69
      %p71 = scmp.ne.s32.totalorder %s63, %s66
      %p72 = scmp.eq.s32.totalorder %s11, 0
      %p73 = por %p71, %p72
      %p74 = scmp.ne.s32.totalorder %s63, %s66
      %p75 = scmp.eq.s32.totalorder %s16, 1
      %p76 = por %p74, %p75
      %p77 = scmp.ne.s32.totalorder %s66, %s67
      %p78 = scmp.eq.s32.totalorder %s16, 0
      %p79 = por %p77, %p78
      %p80 = scmp.ne.s32.totalorder %s66, %s67
      %p81 = scmp.eq.s32.totalorder %s17, 1
      %p82 = por %p80, %p81
      %p84 = scmp.ne.s32.totalorder %s67, %s83
      %p85 = scmp.eq.s32.totalorder %s17, 0
      %p86 = por %p84, %p85
      %s87 = ssub.s32 %s11, %s18
      %p88 = scmp.eq.s32.totalorder %s87, 0
      %s90 = sadd.s32 %s89, 1
      %s91 = scalar_select %p88, %s89, %s90
      %p94 = pneg %p88
      %p95 = scmp.eq.s32.totalorder %s11, 1
      %p96 = por %p94, %p95
      %p97 = scmp.ne.s32.totalorder %s89, %s92
      %p98 = scmp.eq.s32.totalorder %s11, 0
      %p99 = por %p97, %p98
      %p100 = scmp.ne.s32.totalorder %s89, %s92
      %p101 = scmp.eq.s32.totalorder %s16, 1
      %p102 = por %p100, %p101
      %p103 = scmp.ne.s32.totalorder %s92, %s93
      %p104 = scmp.eq.s32.totalorder %s16, 0
      %p105 = por %p103, %p104
      %p106 = scmp.ne.s32.totalorder %s92, %s93
      %p107 = scmp.eq.s32.totalorder %s17, 1
      %p108 = por %p106, %p107
      %p110 = scmp.ne.s32.totalorder %s93, %s109
      %p111 = scmp.eq.s32.totalorder %s17, 0
      %p112 = por %p110, %p111
      %p113 = scmp.le.s32.totalorder 1, %s11
      %p114 = scmp.lt.s32.totalorder %s11, 3
      %p115 = pnand %p113, %p114
      %p116 = pneg %p115
      // Predicated region
      $region9: #{tpu_custom_call.1} parent=5 // pred_check
        _
      $region10: #{tpu_custom_call.1} parent=5 // pred_check_branch
        %118 = sbr.rel (%p115) target = $region12
      $region11: #{tpu_custom_call.1} parent=5 // pred_region
        %s119 = ssub.s32 %s11, 1
        // Predicated region
        $region13: #{tpu_custom_call.1} parent=11 // pred_check
          %p120 = pneg %p32
        $region14: #{tpu_custom_call.1} parent=11 // pred_check_branch
          %122 = sbr.rel (%p120) target = $region16
        $region15: #{tpu_custom_call.1} parent=11 // pred_region
          %s124 = ssub.s32 16, 16
          %125 = vsyncadd [#allocation3], %s124
          %s127 = sshll.u32 %s0, 4
          %s128 = int_to_ptr.vmem [resolvable:$true] %s127
          %130 = dma.vmem_to_smem %s128, 16, [#allocation2], [#allocation3]
        $region16: #{tpu_custom_call.1} parent=11 // pred_fallthru
          _
        // Predicated region
        $region17: #{tpu_custom_call.1} parent=11 // pred_check
          %p131 = pneg %p53
        $region18: #{tpu_custom_call.1} parent=11 // pred_check_branch
          %133 = sbr.rel (%p131) target = $region20
        $region19: #{tpu_custom_call.1} parent=11 // pred_region
          %s135 = ssub.s32 16, 16
          %136 = vsyncadd [#allocation5], %s135
          %s138 = sshll.u32 %s1, 4
          %s139 = int_to_ptr.vmem [resolvable:$true] %s138
          %141 = dma.vmem_to_smem %s139, 16, [#allocation4], [#allocation5]
        $region20: #{tpu_custom_call.1} parent=11 // pred_fallthru
          _
      $region12: #{tpu_custom_call.1} parent=5 // pred_fallthru
        _
      %p142 = scmp.lt.s32.totalorder %s11, 2
      // Predicated region
      $region21: #{tpu_custom_call.1} parent=5 // pred_check
        %p143 = pneg %p142
      $region22: #{tpu_custom_call.1} parent=5 // pred_check_branch
        %145 = sbr.rel (%p143) target = $region24
      $region23: #{tpu_custom_call.1} parent=5 // pred_region
        // Predicated region
        $region25: #{tpu_custom_call.1} parent=23 // pred_check
          %p146 = pneg %p73
        $region26: #{tpu_custom_call.1} parent=23 // pred_check_branch
          %148 = sbr.rel (%p146) target = $region28
        $region27: #{tpu_custom_call.1} parent=23 // pred_region
          %p149 = scmp.lt.s32.totalorder %s11, 1
          %s150 = scalar_select %p149, %s11, 1
          %s151 = smul.addr %s150, 3
          %s152 = smul.addr %s151, 4
          %s153 = scalar_lea.vmem %s2, %s152
        $region28: #{tpu_custom_call.1} parent=23 // pred_fallthru
          _
      $region24: #{tpu_custom_call.1} parent=5 // pred_fallthru
        _
      %p154 = scmp.le.s32.totalorder 1, %s11
      %p155 = scmp.lt.s32.totalorder %s11, 3
      %p156 = pnand %p154, %p155
      %p157 = pneg %p156
      // Predicated region
      $region29: #{tpu_custom_call.1} parent=5 // pred_check
        _
      $region30: #{tpu_custom_call.1} parent=5 // pred_check_branch
        %159 = sbr.rel (%p156) target = $region32
      $region31: #{tpu_custom_call.1} parent=5 // pred_region
        %s160 = ssub.s32 %s11, 1
        // Predicated region
        $region33: #{tpu_custom_call.1} parent=31 // pred_check
          %p161 = pneg %p32
        $region34: #{tpu_custom_call.1} parent=31 // pred_check_branch
          %163 = sbr.rel (%p161) target = $region36
        $region35: #{tpu_custom_call.1} parent=31 // pred_region
          %164 = dma.done [#allocation3], 16
        $region36: #{tpu_custom_call.1} parent=31 // pred_fallthru
          _
        // Predicated region
        $region37: #{tpu_custom_call.1} parent=31 // pred_check
          %p165 = pneg %p53
        $region38: #{tpu_custom_call.1} parent=31 // pred_check_branch
          %167 = sbr.rel (%p165) target = $region40
        $region39: #{tpu_custom_call.1} parent=31 // pred_region
          %168 = dma.done [#allocation5], 16
        $region40: #{tpu_custom_call.1} parent=31 // pred_fallthru
          _
        %169 = sfence
        %p170 = pneg %p32
        %p171 = pneg %p29
        %p172 = pneg %p53
        %p173 = pneg %p50
        %p174 = scmp.lt.s32.totalorder %s16, 1
        %s175 = scalar_select %p174, %s16, 1
        %s176 = smul.addr %s175, 3
        %s177 = smul.addr %s176, 4
        %s178 = scalar_lea.vmem %s2, %s177
        %p179 = pneg %p79
        %p180 = pneg %p76
        %p181 = pneg %p105
        %p182 = pneg %p102
        %p183 = scmp.lt.s32.totalorder %s16, 1
        %s184 = scalar_select %p183, %s16, 1
        %s185 = smul.addr %s184, 2
        %s186 = smul.addr %s185, 4
        %s187 = scalar_lea.vmem %s3, %s186
        %p188 = scmp.lt.s32.totalorder %s16, 1
        %s189 = scalar_select %p188, %s16, 1
        %s190 = smul.addr %s189, 3
        %s191 = smul.addr %s190, 4
        %s192 = scalar_lea.vmem %s2, %s191
        %p193 = scmp.lt.s32.totalorder %s16, 1
        %s194 = scalar_select %p193, %s16, 1
        %s195 = smul.addr %s194, 2
        %s196 = smul.addr %s195, 4
        %s197 = scalar_lea.vmem %s3, %s196
        %s198 = sld [smem:[#allocation4]]
        %v199 = vstv %s198
        %v200 = vadd.f32 %v199, 0.0
        %s201 = sld [smem:[#allocation4 + $0x1]]
        %v202 = vstv %s201
        %v203 = vadd.f32 %v202, 0.0
        %s204 = sld [smem:[#allocation4 + $0x2]]
        %v205 = vstv %s204
        %v206 = vadd.f32 %v205, 0.0
        %v207 = vld [vmem:[%s192] ss:$4 sm:$0x3]
        %s208 = sld [smem:[#allocation2]]
        %v209 = vstv %s208
        %v210 = vmul.f32 %v207, %v209
        %v211 = vadd.f32 %v200, %v210
        %s212 = sld [smem:[#allocation2 + $0x1b]]
        %v213 = vstv %s212
        %v214 = vmul.f32 %v207, %v213
        %v215 = vadd.f32 %v203, %v214
        %s216 = sld [smem:[#allocation2 + $0x36]]
        %v217 = vstv %s216
        %v218 = vmul.f32 %v207, %v217
        %v219 = vadd.f32 %v206, %v218
        %v220 = vld [vmem:[%s192] ss:$4 sm:$0x7]
        %s221 = sld [smem:[#allocation2 + $0x1]]
        %v222 = vstv %s221
        %v223 = vmul.f32 %v220, %v222
        %225 = vrot.lane.b32.xlu0 %v223, 127
        %v226 = vpop.permute.xlu0 %225
        %v227 = vrot.slane %v226, 1
        %vm228 = vcmask 1039360
        %v229 = vsel %vm228, %v226, %v227
        %v231 = vadd.f32 %v211, %v229
        %s232 = sld [smem:[#allocation2 + $0x1c]]
        %v233 = vstv %s232
        %v234 = vmul.f32 %v220, %v233
        %236 = vrot.lane.b32.xlu0 %v234, 127
        %v237 = vpop.permute.xlu0 %236
        %v238 = vrot.slane %v237, 1
        %v239 = vsel %vm228, %v237, %v238
        %v241 = vadd.f32 %v215, %v239
        %s242 = sld [smem:[#allocation2 + $0x37]]
        %v243 = vstv %s242
        %v244 = vmul.f32 %v220, %v243
        %246 = vrot.lane.b32.xlu0 %v244, 127
        %v247 = vpop.permute.xlu0 %246
        %v248 = vrot.slane %v247, 1
        %v249 = vsel %vm228, %v247, %v248
        %v251 = vadd.f32 %v219, %v249
        %s252 = sld [smem:[#allocation2 + $0x2]]
        %v253 = vstv %s252
        %v254 = vmul.f32 %v220, %v253
        %256 = vrot.lane.b32.xlu0 %v254, 126
        %v257 = vpop.permute.xlu0 %256
        %v258 = vrot.slane %v257, 1
        %vm259 = vcmask 1031168
        %v260 = vsel %vm259, %v257, %v258
        %v262 = vadd.f32 %v231, %v260
        %s263 = sld [smem:[#allocation2 + $0x1d]]
        %v264 = vstv %s263
        %v265 = vmul.f32 %v220, %v264
        %267 = vrot.lane.b32.xlu0 %v265, 126
        %v268 = vpop.permute.xlu0 %267
        %v269 = vrot.slane %v268, 1
        %v270 = vsel %vm259, %v268, %v269
        %v272 = vadd.f32 %v241, %v270
        %s273 = sld [smem:[#allocation2 + $0x38]]
        %v274 = vstv %s273
        %v275 = vmul.f32 %v220, %v274
        %277 = vrot.lane.b32.xlu0 %v275, 126
        %v278 = vpop.permute.xlu0 %277
        %v279 = vrot.slane %v278, 1
        %v280 = vsel %vm259, %v278, %v279
        %v282 = vadd.f32 %v251, %v280
        %s283 = sld [smem:[#allocation2 + $0x3]]
        %v284 = vstv %s283
        %v285 = vmul.f32 %v220, %v284
        %287 = vrot.lane.b32.xlu0 %v285, 112
        %v288 = vpop.permute.xlu0 %287
        %v289 = vrot.slane %v288, 1
        %vm290 = vcmask 916480
        %v291 = vsel %vm290, %v288, %v289
        %v293 = vadd.f32 %v262, %v291
        %s294 = sld [smem:[#allocation2 + $0x1e]]
        %v295 = vstv %s294
        %v296 = vmul.f32 %v220, %v295
        %298 = vrot.lane.b32.xlu0 %v296, 112
        %v299 = vpop.permute.xlu0 %298
        %v300 = vrot.slane %v299, 1
        %v301 = vsel %vm290, %v299, %v300
        %v303 = vadd.f32 %v272, %v301
        %s304 = sld [smem:[#allocation2 + $0x39]]
        %v305 = vstv %s304
        %v306 = vmul.f32 %v220, %v305
        %308 = vrot.lane.b32.xlu0 %v306, 112
        %v309 = vpop.permute.xlu0 %308
        %v310 = vrot.slane %v309, 1
        %v311 = vsel %vm290, %v309, %v310
        %v313 = vadd.f32 %v282, %v311
        %s314 = sld [smem:[#allocation2 + $0x4]]
        %v315 = vstv %s314
        %v316 = vmul.f32 %v220, %v315
        %318 = vrot.lane.b32.xlu0 %v316, 111
        %v319 = vpop.permute.xlu0 %318
        %v320 = vrot.slane %v319, 1
        %vm321 = vcmask 908288
        %v322 = vsel %vm321, %v319, %v320
        %v324 = vadd.f32 %v293, %v322
        %s325 = sld [smem:[#allocation2 + $0x1f]]
        %v326 = vstv %s325
        %v327 = vmul.f32 %v220, %v326
        %329 = vrot.lane.b32.xlu0 %v327, 111
        %v330 = vpop.permute.xlu0 %329
        %v331 = vrot.slane %v330, 1
        %v332 = vsel %vm321, %v330, %v331
        %v334 = vadd.f32 %v303, %v332
        %s335 = sld [smem:[#allocation2 + $0x3a]]
        %v336 = vstv %s335
        %v337 = vmul.f32 %v220, %v336
        %339 = vrot.lane.b32.xlu0 %v337, 111
        %v340 = vpop.permute.xlu0 %339
        %v341 = vrot.slane %v340, 1
        %v342 = vsel %vm321, %v340, %v341
        %v344 = vadd.f32 %v313, %v342
        %s345 = sld [smem:[#allocation2 + $0x5]]
        %v346 = vstv %s345
        %v347 = vmul.f32 %v220, %v346
        %349 = vrot.lane.b32.xlu0 %v347, 110
        %v350 = vpop.permute.xlu0 %349
        %v351 = vrot.slane %v350, 1
        %vm352 = vcmask 900096
        %v353 = vsel %vm352, %v350, %v351
        %v355 = vadd.f32 %v324, %v353
        %s356 = sld [smem:[#allocation2 + $0x20]]
        %v357 = vstv %s356
        %v358 = vmul.f32 %v220, %v357
        %360 = vrot.lane.b32.xlu0 %v358, 110
        %v361 = vpop.permute.xlu0 %360
        %v362 = vrot.slane %v361, 1
        %v363 = vsel %vm352, %v361, %v362
        %v365 = vadd.f32 %v334, %v363
        %s366 = sld [smem:[#allocation2 + $0x3b]]
        %v367 = vstv %s366
        %v368 = vmul.f32 %v220, %v367
        %370 = vrot.lane.b32.xlu0 %v368, 110
        %v371 = vpop.permute.xlu0 %370
        %v372 = vrot.slane %v371, 1
        %v373 = vsel %vm352, %v371, %v372
        %v375 = vadd.f32 %v344, %v373
        %s376 = sld [smem:[#allocation2 + $0x6]]
        %v377 = vstv %s376
        %v378 = vmul.f32 %v220, %v377
        %380 = vrot.lane.b32.xlu0 %v378, 96
        %v381 = vpop.permute.xlu0 %380
        %v382 = vrot.slane %v381, 1
        %vm383 = vcmask 785408
        %v384 = vsel %vm383, %v381, %v382
        %v386 = vadd.f32 %v355, %v384
        %s387 = sld [smem:[#allocation2 + $0x21]]
        %v388 = vstv %s387
        %v389 = vmul.f32 %v220, %v388
        %391 = vrot.lane.b32.xlu0 %v389, 96
        %v392 = vpop.permute.xlu0 %391
        %v393 = vrot.slane %v392, 1
        %v394 = vsel %vm383, %v392, %v393
        %v396 = vadd.f32 %v365, %v394
        %s397 = sld [smem:[#allocation2 + $0x3c]]
        %v398 = vstv %s397
        %v399 = vmul.f32 %v220, %v398
        %401 = vrot.lane.b32.xlu0 %v399, 96
        %v402 = vpop.permute.xlu0 %401
        %v403 = vrot.slane %v402, 1
        %v404 = vsel %vm383, %v402, %v403
        %v406 = vadd.f32 %v375, %v404
        %s407 = sld [smem:[#allocation2 + $0x7]]
        %v408 = vstv %s407
        %v409 = vmul.f32 %v220, %v408
        %411 = vrot.lane.b32.xlu0 %v409, 95
        %v412 = vpop.permute.xlu0 %411
        %v413 = vrot.slane %v412, 1
        %vm414 = vcmask 777216
        %v415 = vsel %vm414, %v412, %v413
        %v417 = vadd.f32 %v386, %v415
        %s418 = sld [smem:[#allocation2 + $0x22]]
        %v419 = vstv %s418
        %v420 = vmul.f32 %v220, %v419
        %422 = vrot.lane.b32.xlu0 %v420, 95
        %v423 = vpop.permute.xlu0 %422
        %v424 = vrot.slane %v423, 1
        %v425 = vsel %vm414, %v423, %v424
        %v427 = vadd.f32 %v396, %v425
        %s428 = sld [smem:[#allocation2 + $0x3d]]
        %v429 = vstv %s428
        %v430 = vmul.f32 %v220, %v429
        %432 = vrot.lane.b32.xlu0 %v430, 95
        %v433 = vpop.permute.xlu0 %432
        %v434 = vrot.slane %v433, 1
        %v435 = vsel %vm414, %v433, %v434
        %v437 = vadd.f32 %v406, %v435
        %s438 = sld [smem:[#allocation2 + $0x8]]
        %v439 = vstv %s438
        %v440 = vmul.f32 %v220, %v439
        %442 = vrot.lane.b32.xlu0 %v440, 94
        %v443 = vpop.permute.xlu0 %442
        %v444 = vrot.slane %v443, 1
        %vm445 = vcmask 769024
        %v446 = vsel %vm445, %v443, %v444
        %v448 = vadd.f32 %v417, %v446
        %s449 = sld [smem:[#allocation2 + $0x23]]
        %v450 = vstv %s449
        %v451 = vmul.f32 %v220, %v450
        %453 = vrot.lane.b32.xlu0 %v451, 94
        %v454 = vpop.permute.xlu0 %453
        %v455 = vrot.slane %v454, 1
        %v456 = vsel %vm445, %v454, %v455
        %v458 = vadd.f32 %v427, %v456
        %s459 = sld [smem:[#allocation2 + $0x3e]]
        %v460 = vstv %s459
        %v461 = vmul.f32 %v220, %v460
        %463 = vrot.lane.b32.xlu0 %v461, 94
        %v464 = vpop.permute.xlu0 %463
        %v465 = vrot.slane %v464, 1
        %v466 = vsel %vm445, %v464, %v465
        %v468 = vadd.f32 %v437, %v466
        %s469 = scalar_lea.vmem %s192, 1
        %v470 = vld [vmem:[%s469] ss:$4 sm:$0x3]
        %s471 = sld [smem:[#allocation2 + $0x9]]
        %v472 = vstv %s471
        %v473 = vmul.f32 %v470, %v472
        %v474 = vadd.f32 %v448, %v473
        %s475 = sld [smem:[#allocation2 + $0x24]]
        %v476 = vstv %s475
        %v477 = vmul.f32 %v470, %v476
        %v478 = vadd.f32 %v458, %v477
        %s479 = sld [smem:[#allocation2 + $0x3f]]
        %v480 = vstv %s479
        %v481 = vmul.f32 %v470, %v480
        %v482 = vadd.f32 %v468, %v481
        %v483 = vld [vmem:[%s469] ss:$4 sm:$0x7]
        %s484 = sld [smem:[#allocation2 + $0xa]]
        %v485 = vstv %s484
        %v486 = vmul.f32 %v483, %v485
        %488 = vrot.lane.b32.xlu0 %v486, 127
        %v489 = vpop.permute.xlu0 %488
        %v490 = vrot.slane %v489, 1
        %v491 = vsel %vm228, %v489, %v490
        %v493 = vadd.f32 %v474, %v491
        %s494 = sld [smem:[#allocation2 + $0x25]]
        %v495 = vstv %s494
        %v496 = vmul.f32 %v483, %v495
        %498 = vrot.lane.b32.xlu0 %v496, 127
        %v499 = vpop.permute.xlu0 %498
        %v500 = vrot.slane %v499, 1
        %v501 = vsel %vm228, %v499, %v500
        %v503 = vadd.f32 %v478, %v501
        %s504 = sld [smem:[#allocation2 + $0x40]]
        %v505 = vstv %s504
        %v506 = vmul.f32 %v483, %v505
        %508 = vrot.lane.b32.xlu0 %v506, 127
        %v509 = vpop.permute.xlu0 %508
        %v510 = vrot.slane %v509, 1
        %v511 = vsel %vm228, %v509, %v510
        %v513 = vadd.f32 %v482, %v511
        %s514 = sld [smem:[#allocation2 + $0xb]]
        %v515 = vstv %s514
        %v516 = vmul.f32 %v483, %v515
        %518 = vrot.lane.b32.xlu0 %v516, 126
        %v519 = vpop.permute.xlu0 %518
        %v520 = vrot.slane %v519, 1
        %v521 = vsel %vm259, %v519, %v520
        %v523 = vadd.f32 %v493, %v521
        %s524 = sld [smem:[#allocation2 + $0x26]]
        %v525 = vstv %s524
        %v526 = vmul.f32 %v483, %v525
        %528 = vrot.lane.b32.xlu0 %v526, 126
        %v529 = vpop.permute.xlu0 %528
        %v530 = vrot.slane %v529, 1
        %v531 = vsel %vm259, %v529, %v530
        %v533 = vadd.f32 %v503, %v531
        %s534 = sld [smem:[#allocation2 + $0x41]]
        %v535 = vstv %s534
        %v536 = vmul.f32 %v483, %v535
        %538 = vrot.lane.b32.xlu0 %v536, 126
        %v539 = vpop.permute.xlu0 %538
        %v540 = vrot.slane %v539, 1
        %v541 = vsel %vm259, %v539, %v540
        %v543 = vadd.f32 %v513, %v541
        %s544 = sld [smem:[#allocation2 + $0xc]]
        %v545 = vstv %s544
        %v546 = vmul.f32 %v483, %v545
        %548 = vrot.lane.b32.xlu0 %v546, 112
        %v549 = vpop.permute.xlu0 %548
        %v550 = vrot.slane %v549, 1
        %v551 = vsel %vm290, %v549, %v550
        %v553 = vadd.f32 %v523, %v551
        %s554 = sld [smem:[#allocation2 + $0x27]]
        %v555 = vstv %s554
        %v556 = vmul.f32 %v483, %v555
        %558 = vrot.lane.b32.xlu0 %v556, 112
        %v559 = vpop.permute.xlu0 %558
        %v560 = vrot.slane %v559, 1
        %v561 = vsel %vm290, %v559, %v560
        %v563 = vadd.f32 %v533, %v561
        %s564 = sld [smem:[#allocation2 + $0x42]]
        %v565 = vstv %s564
        %v566 = vmul.f32 %v483, %v565
        %568 = vrot.lane.b32.xlu0 %v566, 112
        %v569 = vpop.permute.xlu0 %568
        %v570 = vrot.slane %v569, 1
        %v571 = vsel %vm290, %v569, %v570
        %v573 = vadd.f32 %v543, %v571
        %s574 = sld [smem:[#allocation2 + $0xd]]
        %v575 = vstv %s574
        %v576 = vmul.f32 %v483, %v575
        %578 = vrot.lane.b32.xlu0 %v576, 111
        %v579 = vpop.permute.xlu0 %578
        %v580 = vrot.slane %v579, 1
        %v581 = vsel %vm321, %v579, %v580
        %v583 = vadd.f32 %v553, %v581
        %s584 = sld [smem:[#allocation2 + $0x28]]
        %v585 = vstv %s584
        %v586 = vmul.f32 %v483, %v585
        %588 = vrot.lane.b32.xlu0 %v586, 111
        %v589 = vpop.permute.xlu0 %588
        %v590 = vrot.slane %v589, 1
        %v591 = vsel %vm321, %v589, %v590
        %v593 = vadd.f32 %v563, %v591
        %s594 = sld [smem:[#allocation2 + $0x43]]
        %v595 = vstv %s594
        %v596 = vmul.f32 %v483, %v595
        %598 = vrot.lane.b32.xlu0 %v596, 111
        %v599 = vpop.permute.xlu0 %598
        %v600 = vrot.slane %v599, 1
        %v601 = vsel %vm321, %v599, %v600
        %v603 = vadd.f32 %v573, %v601
        %s604 = sld [smem:[#allocation2 + $0xe]]
        %v605 = vstv %s604
        %v606 = vmul.f32 %v483, %v605
        %608 = vrot.lane.b32.xlu0 %v606, 110
        %v609 = vpop.permute.xlu0 %608
        %v610 = vrot.slane %v609, 1
        %v611 = vsel %vm352, %v609, %v610
        %v613 = vadd.f32 %v583, %v611
        %s614 = sld [smem:[#allocation2 + $0x29]]
        %v615 = vstv %s614
        %v616 = vmul.f32 %v483, %v615
        %618 = vrot.lane.b32.xlu0 %v616, 110
        %v619 = vpop.permute.xlu0 %618
        %v620 = vrot.slane %v619, 1
        %v621 = vsel %vm352, %v619, %v620
        %v623 = vadd.f32 %v593, %v621
        %s624 = sld [smem:[#allocation2 + $0x44]]
        %v625 = vstv %s624
        %v626 = vmul.f32 %v483, %v625
        %628 = vrot.lane.b32.xlu0 %v626, 110
        %v629 = vpop.permute.xlu0 %628
        %v630 = vrot.slane %v629, 1
        %v631 = vsel %vm352, %v629, %v630
        %v633 = vadd.f32 %v603, %v631
        %s634 = sld [smem:[#allocation2 + $0xf]]
        %v635 = vstv %s634
        %v636 = vmul.f32 %v483, %v635
        %638 = vrot.lane.b32.xlu0 %v636, 96
        %v639 = vpop.permute.xlu0 %638
        %v640 = vrot.slane %v639, 1
        %v641 = vsel %vm383, %v639, %v640
        %v643 = vadd.f32 %v613, %v641
        %s644 = sld [smem:[#allocation2 + $0x2a]]
        %v645 = vstv %s644
        %v646 = vmul.f32 %v483, %v645
        %648 = vrot.lane.b32.xlu0 %v646, 96
        %v649 = vpop.permute.xlu0 %648
        %v650 = vrot.slane %v649, 1
        %v651 = vsel %vm383, %v649, %v650
        %v653 = vadd.f32 %v623, %v651
        %s654 = sld [smem:[#allocation2 + $0x45]]
        %v655 = vstv %s654
        %v656 = vmul.f32 %v483, %v655
        %658 = vrot.lane.b32.xlu0 %v656, 96
        %v659 = vpop.permute.xlu0 %658
        %v660 = vrot.slane %v659, 1
        %v661 = vsel %vm383, %v659, %v660
        %v663 = vadd.f32 %v633, %v661
        %s664 = sld [smem:[#allocation2 + $0x10]]
        %v665 = vstv %s664
        %v666 = vmul.f32 %v483, %v665
        %668 = vrot.lane.b32.xlu0 %v666, 95
        %v669 = vpop.permute.xlu0 %668
        %v670 = vrot.slane %v669, 1
        %v671 = vsel %vm414, %v669, %v670
        %v673 = vadd.f32 %v643, %v671
        %s674 = sld [smem:[#allocation2 + $0x2b]]
        %v675 = vstv %s674
        %v676 = vmul.f32 %v483, %v675
        %678 = vrot.lane.b32.xlu0 %v676, 95
        %v679 = vpop.permute.xlu0 %678
        %v680 = vrot.slane %v679, 1
        %v681 = vsel %vm414, %v679, %v680
        %v683 = vadd.f32 %v653, %v681
        %s684 = sld [smem:[#allocation2 + $0x46]]
        %v685 = vstv %s684
        %v686 = vmul.f32 %v483, %v685
        %688 = vrot.lane.b32.xlu0 %v686, 95
        %v689 = vpop.permute.xlu0 %688
        %v690 = vrot.slane %v689, 1
        %v691 = vsel %vm414, %v689, %v690
        %v693 = vadd.f32 %v663, %v691
        %s694 = sld [smem:[#allocation2 + $0x11]]
        %v695 = vstv %s694
        %v696 = vmul.f32 %v483, %v695
        %698 = vrot.lane.b32.xlu0 %v696, 94
        %v699 = vpop.permute.xlu0 %698
        %v700 = vrot.slane %v699, 1
        %v701 = vsel %vm445, %v699, %v700
        %v703 = vadd.f32 %v673, %v701
        %s704 = sld [smem:[#allocation2 + $0x2c]]
        %v705 = vstv %s704
        %v706 = vmul.f32 %v483, %v705
        %708 = vrot.lane.b32.xlu0 %v706, 94
        %v709 = vpop.permute.xlu0 %708
        %v710 = vrot.slane %v709, 1
        %v711 = vsel %vm445, %v709, %v710
        %v713 = vadd.f32 %v683, %v711
        %s714 = sld [smem:[#allocation2 + $0x47]]
        %v715 = vstv %s714
        %v716 = vmul.f32 %v483, %v715
        %718 = vrot.lane.b32.xlu0 %v716, 94
        %v719 = vpop.permute.xlu0 %718
        %v720 = vrot.slane %v719, 1
        %v721 = vsel %vm445, %v719, %v720
        %v723 = vadd.f32 %v693, %v721
        %s724 = scalar_lea.vmem %s192, 2
        %v725 = vld [vmem:[%s724] ss:$4 sm:$0x3]
        %s726 = sld [smem:[#allocation2 + $0x12]]
        %v727 = vstv %s726
        %v728 = vmul.f32 %v725, %v727
        %v729 = vadd.f32 %v703, %v728
        %s730 = sld [smem:[#allocation2 + $0x2d]]
        %v731 = vstv %s730
        %v732 = vmul.f32 %v725, %v731
        %v733 = vadd.f32 %v713, %v732
        %s734 = sld [smem:[#allocation2 + $0x48]]
        %v735 = vstv %s734
        %v736 = vmul.f32 %v725, %v735
        %v737 = vadd.f32 %v723, %v736
        %v738 = vld [vmem:[%s724] ss:$4 sm:$0x7]
        %s739 = sld [smem:[#allocation2 + $0x13]]
        %v740 = vstv %s739
        %v741 = vmul.f32 %v738, %v740
        %743 = vrot.lane.b32.xlu0 %v741, 127
        %v744 = vpop.permute.xlu0 %743
        %v745 = vrot.slane %v744, 1
        %v746 = vsel %vm228, %v744, %v745
        %v748 = vadd.f32 %v729, %v746
        %s749 = sld [smem:[#allocation2 + $0x2e]]
        %v750 = vstv %s749
        %v751 = vmul.f32 %v738, %v750
        %753 = vrot.lane.b32.xlu0 %v751, 127
        %v754 = vpop.permute.xlu0 %753
        %v755 = vrot.slane %v754, 1
        %v756 = vsel %vm228, %v754, %v755
        %v758 = vadd.f32 %v733, %v756
        %s759 = sld [smem:[#allocation2 + $0x49]]
        %v760 = vstv %s759
        %v761 = vmul.f32 %v738, %v760
        %763 = vrot.lane.b32.xlu0 %v761, 127
        %v764 = vpop.permute.xlu0 %763
        %v765 = vrot.slane %v764, 1
        %v766 = vsel %vm228, %v764, %v765
        %v768 = vadd.f32 %v737, %v766
        %s769 = sld [smem:[#allocation2 + $0x14]]
        %v770 = vstv %s769
        %v771 = vmul.f32 %v738, %v770
        %773 = vrot.lane.b32.xlu0 %v771, 126
        %v774 = vpop.permute.xlu0 %773
        %v775 = vrot.slane %v774, 1
        %v776 = vsel %vm259, %v774, %v775
        %v778 = vadd.f32 %v748, %v776
        %s779 = sld [smem:[#allocation2 + $0x2f]]
        %v780 = vstv %s779
        %v781 = vmul.f32 %v738, %v780
        %783 = vrot.lane.b32.xlu0 %v781, 126
        %v784 = vpop.permute.xlu0 %783
        %v785 = vrot.slane %v784, 1
        %v786 = vsel %vm259, %v784, %v785
        %v788 = vadd.f32 %v758, %v786
        %s789 = sld [smem:[#allocation2 + $0x4a]]
        %v790 = vstv %s789
        %v791 = vmul.f32 %v738, %v790
        %793 = vrot.lane.b32.xlu0 %v791, 126
        %v794 = vpop.permute.xlu0 %793
        %v795 = vrot.slane %v794, 1
        %v796 = vsel %vm259, %v794, %v795
        %v798 = vadd.f32 %v768, %v796
        %s799 = sld [smem:[#allocation2 + $0x15]]
        %v800 = vstv %s799
        %v801 = vmul.f32 %v738, %v800
        %803 = vrot.lane.b32.xlu0 %v801, 112
        %v804 = vpop.permute.xlu0 %803
        %v805 = vrot.slane %v804, 1
        %v806 = vsel %vm290, %v804, %v805
        %v808 = vadd.f32 %v778, %v806
        %s809 = sld [smem:[#allocation2 + $0x30]]
        %v810 = vstv %s809
        %v811 = vmul.f32 %v738, %v810
        %813 = vrot.lane.b32.xlu0 %v811, 112
        %v814 = vpop.permute.xlu0 %813
        %v815 = vrot.slane %v814, 1
        %v816 = vsel %vm290, %v814, %v815
        %v818 = vadd.f32 %v788, %v816
        %s819 = sld [smem:[#allocation2 + $0x4b]]
        %v820 = vstv %s819
        %v821 = vmul.f32 %v738, %v820
        %823 = vrot.lane.b32.xlu0 %v821, 112
        %v824 = vpop.permute.xlu0 %823
        %v825 = vrot.slane %v824, 1
        %v826 = vsel %vm290, %v824, %v825
        %v828 = vadd.f32 %v798, %v826
        %s829 = sld [smem:[#allocation2 + $0x16]]
        %v830 = vstv %s829
        %v831 = vmul.f32 %v738, %v830
        %833 = vrot.lane.b32.xlu0 %v831, 111
        %v834 = vpop.permute.xlu0 %833
        %v835 = vrot.slane %v834, 1
        %v836 = vsel %vm321, %v834, %v835
        %v838 = vadd.f32 %v808, %v836
        %s839 = sld [smem:[#allocation2 + $0x31]]
        %v840 = vstv %s839
        %v841 = vmul.f32 %v738, %v840
        %843 = vrot.lane.b32.xlu0 %v841, 111
        %v844 = vpop.permute.xlu0 %843
        %v845 = vrot.slane %v844, 1
        %v846 = vsel %vm321, %v844, %v845
        %v848 = vadd.f32 %v818, %v846
        %s849 = sld [smem:[#allocation2 + $0x4c]]
        %v850 = vstv %s849
        %v851 = vmul.f32 %v738, %v850
        %853 = vrot.lane.b32.xlu0 %v851, 111
        %v854 = vpop.permute.xlu0 %853
        %v855 = vrot.slane %v854, 1
        %v856 = vsel %vm321, %v854, %v855
        %v858 = vadd.f32 %v828, %v856
        %s859 = sld [smem:[#allocation2 + $0x17]]
        %v860 = vstv %s859
        %v861 = vmul.f32 %v738, %v860
        %863 = vrot.lane.b32.xlu0 %v861, 110
        %v864 = vpop.permute.xlu0 %863
        %v865 = vrot.slane %v864, 1
        %v866 = vsel %vm352, %v864, %v865
        %v868 = vadd.f32 %v838, %v866
        %s869 = sld [smem:[#allocation2 + $0x32]]
        %v870 = vstv %s869
        %v871 = vmul.f32 %v738, %v870
        %873 = vrot.lane.b32.xlu0 %v871, 110
        %v874 = vpop.permute.xlu0 %873
        %v875 = vrot.slane %v874, 1
        %v876 = vsel %vm352, %v874, %v875
        %v878 = vadd.f32 %v848, %v876
        %s879 = sld [smem:[#allocation2 + $0x4d]]
        %v880 = vstv %s879
        %v881 = vmul.f32 %v738, %v880
        %883 = vrot.lane.b32.xlu0 %v881, 110
        %v884 = vpop.permute.xlu0 %883
        %v885 = vrot.slane %v884, 1
        %v886 = vsel %vm352, %v884, %v885
        %v888 = vadd.f32 %v858, %v886
        %s889 = sld [smem:[#allocation2 + $0x18]]
        %v890 = vstv %s889
        %v891 = vmul.f32 %v738, %v890
        %893 = vrot.lane.b32.xlu0 %v891, 96
        %v894 = vpop.permute.xlu0 %893
        %v895 = vrot.slane %v894, 1
        %v896 = vsel %vm383, %v894, %v895
        %v898 = vadd.f32 %v868, %v896
        %s899 = sld [smem:[#allocation2 + $0x33]]
        %v900 = vstv %s899
        %v901 = vmul.f32 %v738, %v900
        %903 = vrot.lane.b32.xlu0 %v901, 96
        %v904 = vpop.permute.xlu0 %903
        %v905 = vrot.slane %v904, 1
        %v906 = vsel %vm383, %v904, %v905
        %v908 = vadd.f32 %v878, %v906
        %s909 = sld [smem:[#allocation2 + $0x4e]]
        %v910 = vstv %s909
        %v911 = vmul.f32 %v738, %v910
        %913 = vrot.lane.b32.xlu0 %v911, 96
        %v914 = vpop.permute.xlu0 %913
        %v915 = vrot.slane %v914, 1
        %v916 = vsel %vm383, %v914, %v915
        %v918 = vadd.f32 %v888, %v916
        %s919 = sld [smem:[#allocation2 + $0x19]]
        %v920 = vstv %s919
        %v921 = vmul.f32 %v738, %v920
        %923 = vrot.lane.b32.xlu0 %v921, 95
        %v924 = vpop.permute.xlu0 %923
        %v925 = vrot.slane %v924, 1
        %v926 = vsel %vm414, %v924, %v925
        %v928 = vadd.f32 %v898, %v926
        %s929 = sld [smem:[#allocation2 + $0x34]]
        %v930 = vstv %s929
        %v931 = vmul.f32 %v738, %v930
        %933 = vrot.lane.b32.xlu0 %v931, 95
        %v934 = vpop.permute.xlu0 %933
        %v935 = vrot.slane %v934, 1
        %v936 = vsel %vm414, %v934, %v935
        %v938 = vadd.f32 %v908, %v936
        %s939 = sld [smem:[#allocation2 + $0x4f]]
        %v940 = vstv %s939
        %v941 = vmul.f32 %v738, %v940
        %943 = vrot.lane.b32.xlu0 %v941, 95
        %v944 = vpop.permute.xlu0 %943
        %v945 = vrot.slane %v944, 1
        %v946 = vsel %vm414, %v944, %v945
        %v948 = vadd.f32 %v918, %v946
        %s949 = sld [smem:[#allocation2 + $0x1a]]
        %v950 = vstv %s949
        %v951 = vmul.f32 %v738, %v950
        %953 = vrot.lane.b32.xlu0 %v951, 94
        %v954 = vpop.permute.xlu0 %953
        %v955 = vrot.slane %v954, 1
        %v956 = vsel %vm445, %v954, %v955
        %v958 = vadd.f32 %v928, %v956
        %s959 = sld [smem:[#allocation2 + $0x35]]
        %v960 = vstv %s959
        %v961 = vmul.f32 %v738, %v960
        %963 = vrot.lane.b32.xlu0 %v961, 94
        %v964 = vpop.permute.xlu0 %963
        %v965 = vrot.slane %v964, 1
        %v966 = vsel %vm445, %v964, %v965
        %v968 = vadd.f32 %v938, %v966
        %s969 = sld [smem:[#allocation2 + $0x50]]
        %v970 = vstv %s969
        %v971 = vmul.f32 %v738, %v970
        %973 = vrot.lane.b32.xlu0 %v971, 94
        %v974 = vpop.permute.xlu0 %973
        %v975 = vrot.slane %v974, 1
        %v976 = vsel %vm445, %v974, %v975
        %v978 = vadd.f32 %v948, %v976
        %v979 = vtanh.pop %v958
        %v980 = vtanh.pop %v979
        %v981 = vtanh.pop %v980
        %v982 = vlaneseq
        %vm983 = vcmp.ge.s32.totalorder %v982, 0
        %vm984 = vcmp.lt.s32.totalorder %v982, 256
        %vm985 = vmand %vm983, %vm984
        %986 = vst.msk [vmem:[%s197] ss:$4 sm:$0x3] %vm985, %v981
        %v987 = vtanh.pop %v968
        %v988 = vtanh.pop %v987
        %v989 = vtanh.pop %v988
        %s990 = scalar_lea.vmem %s197, 1
        %991 = vst.msk [vmem:[%s990] ss:$4 sm:$0x3] %vm985, %v989
        %v992 = vtanh.pop %v978
        %v993 = vtanh.pop %v992
        %v994 = vtanh.pop %v993
        %s995 = scalar_lea.vmem %s197, 2
        %996 = vst.msk [vmem:[%s995] ss:$4 sm:$0x3] %vm985, %v994
        %p997 = scmp.lt.s32.totalorder %s16, 1
        %s998 = scalar_select %p997, %s16, 1
        %s999 = smul.addr %s998, 2
        %s1000 = smul.addr %s999, 4
        %s1001 = scalar_lea.vmem %s3, %s1000
        // Predicated region
        $region41: #{tpu_custom_call.1} parent=31 // pred_check
          %p1002 = pneg %p102
        $region42: #{tpu_custom_call.1} parent=31 // pred_check_branch
          %1004 = sbr.rel (%p1002) target = $region44
        $region43: #{tpu_custom_call.1} parent=31 // pred_region
          _
        $region44: #{tpu_custom_call.1} parent=31 // pred_fallthru
          _
      $region32: #{tpu_custom_call.1} parent=5 // pred_fallthru
        _
      %p1005 = scmp.le.s32.totalorder 2, %s11
      // Predicated region
      $region45: #{tpu_custom_call.1} parent=5 // pred_check
        %p1006 = pneg %p1005
      $region46: #{tpu_custom_call.1} parent=5 // pred_check_branch
        %1008 = sbr.rel (%p1006) target = $region48
      $region47: #{tpu_custom_call.1} parent=5 // pred_region
        %s1009 = ssub.s32 %s11, 2
        // Predicated region
        $region49: #{tpu_custom_call.1} parent=47 // pred_check
          %p1010 = pneg %p108
        $region50: #{tpu_custom_call.1} parent=47 // pred_check_branch
          %1012 = sbr.rel (%p1010) target = $region52
        $region51: #{tpu_custom_call.1} parent=47 // pred_region
          %p1013 = scmp.lt.s32.totalorder %s17, 1
          %s1014 = scalar_select %p1013, %s17, 1
          %s1015 = smul.addr %s1014, 2
          %s1016 = smul.addr %s1015, 4
          %s1017 = scalar_lea.vmem %s3, %s1016
        $region52: #{tpu_custom_call.1} parent=47 // pred_fallthru
          _
      $region48: #{tpu_custom_call.1} parent=5 // pred_fallthru
        _
    $region6: #{tpu_custom_call.1} parent=1 // loop_footer
      %s15 = sadd.s32 1, %s11
    $region7: #{tpu_custom_call.1} parent=1 // loop_footer_branch
      %10 = sbr.rel target = $region3
    $region8: #{tpu_custom_call.1} parent=1 // loop_exit
      _
    %1018 = vsyncpa [#allocation3], 1
    %s1019 = scalar_lea.sflag [#allocation3], 1
    %1020 = vsyncpa %s1019, 1
    %1021 = vsyncpa [#allocation5], 1

</llo_original>
